<compile_context>
chip_gen: v7x
topology: tpu7x:2x2x1
jax: 0.10.0
libtpu: 0.0.40
codegen_flags: <defaults>
</compile_context>

<pallas_src>
import functools

import jax
import jax.numpy as jnp
from jax import lax
from jax.experimental import pallas as pl
from jax.experimental.pallas import tpu as pltpu


# ------------------------------ Pallas kernel ------------------------------
def _bottleneck_kernel(H,
                       x_ref, w1_ref, w2_ref, w3_ref,
                       b1_ref, b2_ref, b3_ref, out_ref):
    WC1 = w2_ref.shape[1]            # W * C1
    M = x_ref.shape[0]               # images_per_step * H rows

    # ---- stage 1: 1x1 conv (block-diagonal matmul, BN scale pre-folded) ----
    y1 = jnp.dot(x_ref[...], w1_ref[...],
                 preferred_element_type=jnp.float32)
    y1 = jnp.maximum(y1 + b1_ref[...], 0.0)           # (M, W*C1) f32

    # ---- stage 2: 3x3 conv, stride=1, padding=1 ----
    # Row (kh) shifts: in-register sublane rolls (XLU slot, overlaps MXU) with
    # per-image boundary rows zeroed; no halo scratch / store->load roundtrip.
    # Column (kw) shifts + width zero-padding are folded into the banded w2.
    local = lax.broadcasted_iota(jnp.int32, (M, WC1), 0) % H
    y_prev = jnp.where(local == 0, 0.0,
                       pltpu.roll(y1, shift=1, axis=0))      # row h -> y1[h-1]
    y_next = jnp.where(local == H - 1, 0.0,
                       pltpu.roll(y1, shift=M - 1, axis=0))  # row h -> y1[h+1]

    y1b = y1.astype(jnp.bfloat16)
    y_prev = y_prev.astype(jnp.bfloat16)
    y_next = y_next.astype(jnp.bfloat16)

    # Three accumulating K = W*C1 matmuls: only one (M, W*C1) LHS live at a
    # time (no (M, 3*W*C1) concat to spill at larger M).
    y2 = jnp.dot(y_prev, w2_ref[0:WC1, :],
                 preferred_element_type=jnp.float32)
    y2 = y2 + jnp.dot(y1b, w2_ref[WC1:2 * WC1, :],
                      preferred_element_type=jnp.float32)
    y2 = y2 + jnp.dot(y_next, w2_ref[2 * WC1:3 * WC1, :],
                      preferred_element_type=jnp.float32)
    y2 = jnp.maximum(y2 + b2_ref[...], 0.0)            # (M, W*C1) f32

    # ---- stage 3: 1x1 conv ----
    y3 = jnp.dot(y2.astype(jnp.bfloat16), w3_ref[...],
                 preferred_element_type=jnp.float32)
    y3 = jnp.maximum(y3 + b3_ref[...], 0.0)            # (M, W*C3) f32
    out_ref[...] = y3.astype(out_ref.dtype)


# ------------------------- weight layout plumbing ---------------------------
def _block_diag_weight(w_oi11, W, scale):
    """(Cout, Cin, 1, 1) OIHW weight -> (W*Cin, W*Cout) block-diag, BN-scaled."""
    w_io = jnp.transpose(w_oi11[:, :, 0, 0], (1, 0)) * scale[None, :]
    return jnp.kron(jnp.eye(W, dtype=jnp.float32), w_io)


def _banded_weight_3x3(w_oikk, W, scale):
    """Fold kw shifts + width zero-padding of a 3x3 conv into a banded matrix.

    Returns (3*W*Cin, W*Cout); row block kh multiplies input rows shifted by
    dh = kh - 1 (supplied in-kernel via pltpu.roll).  BN scale is folded into
    the output-channel columns.
    """
    O, I, KH, KW = w_oikk.shape
    slabs = []
    for kh in range(KH):
        acc = jnp.zeros((W * I, W * O), jnp.float32)
        for kw in range(KW):
            dw = kw - 1
            # shift[w_in, w_out] = 1 iff w_in == w_out + dw (zero pad in width)
            shift = jnp.eye(W, k=-dw, dtype=jnp.float32)
            tap = jnp.transpose(w_oikk[:, :, kh, kw], (1, 0)) * scale[None, :]
            acc = acc + jnp.kron(shift, tap)
        slabs.append(acc)
    return jnp.concatenate(slabs, axis=0)


def _pick_images_per_step(N, H, target_rows=256, min_rows=128):
    """Images per grid step: aim for ~256 matmul rows (v6e/v7x MXU height)."""
    b = max(1, min(N, target_rows // max(H, 1)))
    while N % b:
        b -= 1
    # v7x: keep >= 2 grid steps (both TensorCores busy) when that still gives
    # a reasonably tall matmul; otherwise prefer filling the MXU rows.
    if N // b < 2:
        for cand in range(b - 1, 0, -1):
            if N % cand == 0 and N // cand >= 2 and cand * H >= min_rows:
                b = cand
                break
    return b


# ------------------------------ JAX wrapper ---------------------------------
def dirac_bottleneck(x_nchw, params):
    """x_nchw: (N, Cin, H, W) float32.  Returns (N, 4*out_channels, H, W)."""
    N, Cin, H, W = x_nchw.shape
    C1 = params["w1"].shape[0]
    C3 = params["w3"].shape[0]
    WCin, WC1, WC3 = W * Cin, W * C1, W * C3

    B = _pick_images_per_step(N, H)
    M = B * H

    # Lane-dense layout: rows = N*H, lanes = W*C.  bf16 MXU inputs.
    # TODO(synk): when chaining bottlenecks, keep activations in this
    #             (N*H, W*C) layout between blocks to avoid the HBM transpose
    #             round-trips at the block boundaries.
    x_rows = (jnp.transpose(x_nchw, (0, 2, 3, 1))
              .reshape(N * H, WCin).astype(jnp.bfloat16))

    # BN scales folded into the weight columns host-side.
    w1 = _block_diag_weight(params["w1"], W, params["s1"]).astype(jnp.bfloat16)
    w2 = _banded_weight_3x3(params["w2"], W, params["s2"]).astype(jnp.bfloat16)
    w3 = _block_diag_weight(params["w3"], W, params["s3"]).astype(jnp.bfloat16)

    b1 = jnp.tile(params["b1"], W)[None, :].astype(jnp.float32)
    b2 = jnp.tile(params["b2"], W)[None, :].astype(jnp.float32)
    b3 = jnp.tile(params["b3"], W)[None, :].astype(jnp.float32)

    flops = 2 * N * H * (WCin * WC1 + 3 * WC1 * WC1 + WC1 * WC3)
    bytes_accessed = (x_rows.size * 2
                      + (w1.size + w2.size + w3.size) * 2
                      + (b1.size + b2.size + b3.size) * 4
                      + N * H * WC3 * 4)

    kernel = functools.partial(_bottleneck_kernel, H)
    out = pl.pallas_call(
        kernel,
        out_shape=jax.ShapeDtypeStruct((N * H, WC3), jnp.float32),
        grid_spec=pltpu.PrefetchScalarGridSpec(
            num_scalar_prefetch=0,
            grid=(N // B,),
            in_specs=[
                pl.BlockSpec((M, WCin), lambda n: (n, 0)),
                pl.BlockSpec((WCin, WC1), lambda n: (0, 0)),
                pl.BlockSpec((3 * WC1, WC1), lambda n: (0, 0)),
                pl.BlockSpec((WC1, WC3), lambda n: (0, 0)),
                pl.BlockSpec((1, WC1), lambda n: (0, 0)),
                pl.BlockSpec((1, WC1), lambda n: (0, 0)),
                pl.BlockSpec((1, WC3), lambda n: (0, 0)),
            ],
            out_specs=pl.BlockSpec((M, WC3), lambda n: (n, 0)),
        ),
        compiler_params=pltpu.CompilerParams(
            dimension_semantics=("parallel",),        # grid steps independent
            vmem_limit_bytes=64 * 1024 * 1024),
        cost_estimate=pl.CostEstimate(
            flops=flops, transcendentals=0, bytes_accessed=bytes_accessed),
    )(x_rows, w1, w2, w3, b1, b2, b3)

    return jnp.transpose(out.reshape(N, H, W, C3), (0, 3, 1, 2))


# --------------------------- parameter construction -------------------------
def _dirac_conv_weight(key, out_c, in_c, k):
    """Effective weight of DiracConv2d: alpha*delta + beta*normalize(w), OIHW."""
    fan_in = in_c * k * k
    bound = 1.0 / jnp.sqrt(jnp.float32(fan_in))
    w = jax.random.uniform(key, (out_c, in_c, k, k), jnp.float32, -bound, bound)

    delta = jnp.zeros((out_c, in_c, k, k), jnp.float32)
    m = min(out_c, in_c)
    idx = jnp.arange(m)
    delta = delta.at[idx, idx, k // 2, k // 2].set(1.0)

    alpha = jnp.ones((out_c,), jnp.float32)
    beta = jnp.full((out_c,), 0.1, jnp.float32)

    w_flat = w.reshape(out_c, -1)
    norm = jnp.sqrt(jnp.sum(w_flat * w_flat, axis=1, keepdims=True))
    w_n = (w_flat / jnp.maximum(norm, 1e-12)).reshape(w.shape)

    return alpha[:, None, None, None] * delta + beta[:, None, None, None] * w_n


def _bn_fold(channels, eps=1e-5):
    """Eval-mode BatchNorm with default params -> per-channel scale/shift."""
    gamma = jnp.ones((channels,), jnp.float32)
    beta = jnp.zeros((channels,), jnp.float32)
    mean = jnp.zeros((channels,), jnp.float32)
    var = jnp.ones((channels,), jnp.float32)
    scale = gamma / jnp.sqrt(var + eps)
    shift = beta - mean * scale
    return scale, shift


def make_params(key, in_channels, out_channels, expansion=4):
    k1, k2, k3 = jax.random.split(key, 3)
    c1 = out_channels
    c3 = out_channels * expansion
    w1 = _dirac_conv_weight(k1, c1, in_channels, 1)   # (C1, Cin, 1, 1)
    w2 = _dirac_conv_weight(k2, c1, c1, 3)            # (C1, C1, 3, 3)
    w3 = _dirac_conv_weight(k3, c3, c1, 1)            # (C3, C1, 1, 1)
    s1, b1 = _bn_fold(c1)
    s2, b2 = _bn_fold(c1)
    s3, b3 = _bn_fold(c3)
    return dict(w1=w1, w2=w2, w3=w3, s1=s1, b1=b1, s2=s2, b2=b2, s3=s3, b3=b3)


# ------------------------------ pure-JAX reference --------------------------
def reference(x_nchw, params):
    def conv_bn_relu(x, w_oihw, scale, shift, pad):
        y = lax.conv_general_dilated(
            x, w_oihw, window_strides=(1, 1), padding=pad,
            dimension_numbers=("NCHW", "OIHW", "NCHW"))
        y = y * scale[None, :, None, None] + shift[None, :, None, None]
        return jnp.maximum(y, 0.0)

    y = conv_bn_relu(x_nchw, params["w1"], params["s1"], params["b1"],
                     ((0, 0), (0, 0)))
    y = conv_bn_relu(y, params["w2"], params["s2"], params["b2"],
                     ((1, 1), (1, 1)))
    y = conv_bn_relu(y, params["w3"], params["s3"], params["b3"],
                     ((0, 0), (0, 0)))
    return y


# ----------------------------------- main -----------------------------------
if __name__ == "__main__":
    key = jax.random.PRNGKey(0)
    k_x, k_p = jax.random.split(key)

    N, Cin, H, W = 2, 4, 16, 16
    out_channels = 8
    x = jax.random.normal(k_x, (N, Cin, H, W), jnp.float32)

    params = make_params(k_p, Cin, out_channels)

    out = jax.block_until_ready(dirac_bottleneck(x, params))
    ref = jax.block_until_ready(reference(x, params))

    assert out.shape == (N, out_channels * 4, H, W), out.shape
    err = float(jnp.max(jnp.abs(out - ref)))
    ref_max = float(jnp.max(jnp.abs(ref)))
    # bf16 MXU inputs with f32 accumulation vs. the exact f32 reference:
    # allow bf16-level mismatch (structural errors would be >10x larger).
    tol = 0.03 * ref_max + 0.03
    assert err <= tol, f"max abs error {err} (ref max {ref_max}, tol {tol})"

    print("KERNEL_OK")
</pallas_src>

<mosaic_0001>
module attributes {stable_mosaic.version = 11 : i64} {
  func.func @_bottleneck_kernel(%arg0: i32, %arg1: memref<32x64xbf16, #tpu.memory_space<vmem>>, %arg2: memref<64x128xbf16, #tpu.memory_space<vmem>>, %arg3: memref<384x128xbf16, #tpu.memory_space<vmem>>, %arg4: memref<128x512xbf16, #tpu.memory_space<vmem>>, %arg5: memref<1x128xf32, #tpu.memory_space<vmem>>, %arg6: memref<1x128xf32, #tpu.memory_space<vmem>>, %arg7: memref<1x512xf32, #tpu.memory_space<vmem>>, %arg8: memref<32x512xf32, #tpu.memory_space<vmem>>) attributes {dimension_semantics = [#tpu.dimension_semantics<parallel>], iteration_bounds = array<i64: 1>, scalar_prefetch = 0 : i64, scratch_operands = 0 : i64, tpu.core_type = #tpu.core_type<tc>, window_params = [{transform_indices = @transform_0, window_bounds = array<i64: 32, 64>}, {pipeline_mode = #tpu.pipeline_mode<synchronous>, transform_indices = @transform_1, window_bounds = array<i64: 64, 128>}, {pipeline_mode = #tpu.pipeline_mode<synchronous>, transform_indices = @transform_2, window_bounds = array<i64: 384, 128>}, {pipeline_mode = #tpu.pipeline_mode<synchronous>, transform_indices = @transform_3, window_bounds = array<i64: 128, 512>}, {pipeline_mode = #tpu.pipeline_mode<synchronous>, transform_indices = @transform_4, window_bounds = array<i64: 1, 128>}, {pipeline_mode = #tpu.pipeline_mode<synchronous>, transform_indices = @transform_5, window_bounds = array<i64: 1, 128>}, {pipeline_mode = #tpu.pipeline_mode<synchronous>, transform_indices = @transform_6, window_bounds = array<i64: 1, 512>}, {transform_indices = @transform_7, window_bounds = array<i64: 32, 512>}]} {
    %c0 = arith.constant 0 : index
    %c0_0 = arith.constant 0 : index
    %0 = vector.load %arg1[%c0, %c0_0] : memref<32x64xbf16, #tpu.memory_space<vmem>>, vector<32x64xbf16>
    %c0_1 = arith.constant 0 : index
    %c0_2 = arith.constant 0 : index
    %1 = vector.load %arg2[%c0_1, %c0_2] : memref<64x128xbf16, #tpu.memory_space<vmem>>, vector<64x128xbf16>
    %cst = arith.constant dense<0.000000e+00> : vector<32x128xf32>
    %2 = tpu.matmul %0, %1, %cst {dimension_numbers = #tpu.dot_dimension_numbers<[1], [0], [0], [1], [0, 0, 1, 1], [], []>} : vector<32x64xbf16>, vector<64x128xbf16>, vector<32x128xf32> -> vector<32x128xf32>
    %c0_3 = arith.constant 0 : index
    %c0_4 = arith.constant 0 : index
    %3 = vector.load %arg5[%c0_3, %c0_4] : memref<1x128xf32, #tpu.memory_space<vmem>>, vector<1x128xf32>
    %4 = vector.broadcast %3 : vector<1x128xf32> to vector<32x128xf32>
    %5 = arith.addf %2, %4 : vector<32x128xf32>
    %cst_5 = arith.constant 0.000000e+00 : f32
    %6 = vector.broadcast %cst_5 : f32 to vector<32x128xf32>
    %7 = arith.maximumf %5, %6 : vector<32x128xf32>
    %8 = tpu.iota {dimensions = array<i32: 0>} : vector<32x128xi32>
    %c16_i32 = arith.constant 16 : i32
    %c0_i32 = arith.constant 0 : i32
    %9 = arith.cmpi eq, %c16_i32, %c0_i32 : i32
    %c1_i32 = arith.constant 1 : i32
    %10 = arith.select %9, %c1_i32, %c16_i32 : i32
    %11 = vector.broadcast %10 : i32 to vector<32x128xi32>
    %12 = arith.remsi %8, %11 : vector<32x128xi32>
    %c0_i32_6 = arith.constant 0 : i32
    %13 = vector.broadcast %c0_i32_6 : i32 to vector<32x128xi32>
    %14 = arith.cmpi ne, %12, %13 : vector<32x128xi32>
    %c0_i32_7 = arith.constant 0 : i32
    %15 = vector.broadcast %c0_i32_7 : i32 to vector<32x128xi32>
    %16 = arith.cmpi slt, %12, %15 : vector<32x128xi32>
    %c0_i32_8 = arith.constant 0 : i32
    %17 = arith.cmpi slt, %10, %c0_i32_8 : i32
    %18 = vector.broadcast %17 : i1 to vector<32x128xi1>
    %19 = vector.broadcast %18 : vector<32x128xi1> to vector<32x128xi1>
    %20 = arith.xori %16, %19 : vector<32x128xi1>
    %21 = arith.andi %20, %14 : vector<32x128xi1>
    %22 = vector.broadcast %10 : i32 to vector<32x128xi32>
    %23 = arith.addi %12, %22 : vector<32x128xi32>
    %24 = arith.select %21, %23, %12 : vector<32x128xi1>, vector<32x128xi32>
    %c0_i32_9 = arith.constant 0 : i32
    %25 = vector.broadcast %c0_i32_9 : i32 to vector<32x128xi32>
    %26 = arith.cmpi eq, %24, %25 : vector<32x128xi32>
    %c1_i32_10 = arith.constant 1 : i32
    %27 = tpu.dynamic_rotate %7 by %c1_i32_10 dim 0 : vector<32x128xf32>, i32 -> vector<32x128xf32>
    %cst_11 = arith.constant 0.000000e+00 : f32
    %28 = vector.broadcast %cst_11 : f32 to vector<32x128xf32>
    %29 = arith.select %26, %28, %27 : vector<32x128xi1>, vector<32x128xf32>
    %c15_i32 = arith.constant 15 : i32
    %30 = vector.broadcast %c15_i32 : i32 to vector<32x128xi32>
    %31 = arith.cmpi eq, %24, %30 : vector<32x128xi32>
    %c31_i32 = arith.constant 31 : i32
    %32 = tpu.dynamic_rotate %7 by %c31_i32 dim 0 : vector<32x128xf32>, i32 -> vector<32x128xf32>
    %cst_12 = arith.constant 0.000000e+00 : f32
    %33 = vector.broadcast %cst_12 : f32 to vector<32x128xf32>
    %34 = arith.select %31, %33, %32 : vector<32x128xi1>, vector<32x128xf32>
    %35 = arith.truncf %7 : vector<32x128xf32> to vector<32x128xbf16>
    %36 = arith.truncf %29 : vector<32x128xf32> to vector<32x128xbf16>
    %37 = arith.truncf %34 : vector<32x128xf32> to vector<32x128xbf16>
    %c0_13 = arith.constant 0 : index
    %c0_14 = arith.constant 0 : index
    %38 = vector.load %arg3[%c0_13, %c0_14] : memref<384x128xbf16, #tpu.memory_space<vmem>>, vector<128x128xbf16>
    %cst_15 = arith.constant dense<0.000000e+00> : vector<32x128xf32>
    %39 = tpu.matmul %36, %38, %cst_15 {dimension_numbers = #tpu.dot_dimension_numbers<[1], [0], [0], [1], [0, 0, 1, 1], [], []>} : vector<32x128xbf16>, vector<128x128xbf16>, vector<32x128xf32> -> vector<32x128xf32>
    %c128 = arith.constant 128 : index
    %c0_16 = arith.constant 0 : index
    %40 = vector.load %arg3[%c128, %c0_16] : memref<384x128xbf16, #tpu.memory_space<vmem>>, vector<128x128xbf16>
    %cst_17 = arith.constant dense<0.000000e+00> : vector<32x128xf32>
    %41 = tpu.matmul %35, %40, %cst_17 {dimension_numbers = #tpu.dot_dimension_numbers<[1], [0], [0], [1], [0, 0, 1, 1], [], []>} : vector<32x128xbf16>, vector<128x128xbf16>, vector<32x128xf32> -> vector<32x128xf32>
    %42 = arith.addf %39, %41 : vector<32x128xf32>
    %c256 = arith.constant 256 : index
    %c0_18 = arith.constant 0 : index
    %43 = vector.load %arg3[%c256, %c0_18] : memref<384x128xbf16, #tpu.memory_space<vmem>>, vector<128x128xbf16>
    %cst_19 = arith.constant dense<0.000000e+00> : vector<32x128xf32>
    %44 = tpu.matmul %37, %43, %cst_19 {dimension_numbers = #tpu.dot_dimension_numbers<[1], [0], [0], [1], [0, 0, 1, 1], [], []>} : vector<32x128xbf16>, vector<128x128xbf16>, vector<32x128xf32> -> vector<32x128xf32>
    %45 = arith.addf %42, %44 : vector<32x128xf32>
    %c0_20 = arith.constant 0 : index
    %c0_21 = arith.constant 0 : index
    %46 = vector.load %arg6[%c0_20, %c0_21] : memref<1x128xf32, #tpu.memory_space<vmem>>, vector<1x128xf32>
    %47 = vector.broadcast %46 : vector<1x128xf32> to vector<32x128xf32>
    %48 = arith.addf %45, %47 : vector<32x128xf32>
    %cst_22 = arith.constant 0.000000e+00 : f32
    %49 = vector.broadcast %cst_22 : f32 to vector<32x128xf32>
    %50 = arith.maximumf %48, %49 : vector<32x128xf32>
    %51 = arith.truncf %50 : vector<32x128xf32> to vector<32x128xbf16>
    %c0_23 = arith.constant 0 : index
    %c0_24 = arith.constant 0 : index
    %52 = vector.load %arg4[%c0_23, %c0_24] : memref<128x512xbf16, #tpu.memory_space<vmem>>, vector<128x512xbf16>
    %cst_25 = arith.constant dense<0.000000e+00> : vector<32x512xf32>
    %53 = tpu.matmul %51, %52, %cst_25 {dimension_numbers = #tpu.dot_dimension_numbers<[1], [0], [0], [1], [0, 0, 1, 1], [], []>} : vector<32x128xbf16>, vector<128x512xbf16>, vector<32x512xf32> -> vector<32x512xf32>
    %c0_26 = arith.constant 0 : index
    %c0_27 = arith.constant 0 : index
    %54 = vector.load %arg7[%c0_26, %c0_27] : memref<1x512xf32, #tpu.memory_space<vmem>>, vector<1x512xf32>
    %55 = vector.broadcast %54 : vector<1x512xf32> to vector<32x512xf32>
    %56 = arith.addf %53, %55 : vector<32x512xf32>
    %cst_28 = arith.constant 0.000000e+00 : f32
    %57 = vector.broadcast %cst_28 : f32 to vector<32x512xf32>
    %58 = arith.maximumf %56, %57 : vector<32x512xf32>
    %c0_29 = arith.constant 0 : index
    %c0_30 = arith.constant 0 : index
    %59 = vector.load %arg8[%c0_29, %c0_30] : memref<32x512xf32, #tpu.memory_space<vmem>>, vector<32x512xf32>
    tpu.vector_store %arg8[%c0_29, %c0_30], %58 {strides = array<i32>} : memref<32x512xf32, #tpu.memory_space<vmem>>, vector<32x512xf32>,
    return
  }
  func.func @transform_0(%arg0: i32) -> (i32, i32) {
    %c0_i32 = arith.constant 0 : i32
    %c0_i32_0 = arith.constant 0 : i32
    return %arg0, %c0_i32 : i32, i32
  }
  func.func @transform_1(%arg0: i32) -> (i32, i32) {
    %c0_i32 = arith.constant 0 : i32
    %c0_i32_0 = arith.constant 0 : i32
    %c0_i32_1 = arith.constant 0 : i32
    return %c0_i32, %c0_i32_0 : i32, i32
  }
  func.func @transform_2(%arg0: i32) -> (i32, i32) {
    %c0_i32 = arith.constant 0 : i32
    %c0_i32_0 = arith.constant 0 : i32
    %c0_i32_1 = arith.constant 0 : i32
    return %c0_i32, %c0_i32_0 : i32, i32
  }
  func.func @transform_3(%arg0: i32) -> (i32, i32) {
    %c0_i32 = arith.constant 0 : i32
    %c0_i32_0 = arith.constant 0 : i32
    %c0_i32_1 = arith.constant 0 : i32
    return %c0_i32, %c0_i32_0 : i32, i32
  }
  func.func @transform_4(%arg0: i32) -> (i32, i32) {
    %c0_i32 = arith.constant 0 : i32
    %c0_i32_0 = arith.constant 0 : i32
    %c0_i32_1 = arith.constant 0 : i32
    return %c0_i32, %c0_i32_0 : i32, i32
  }
  func.func @transform_5(%arg0: i32) -> (i32, i32) {
    %c0_i32 = arith.constant 0 : i32
    %c0_i32_0 = arith.constant 0 : i32
    %c0_i32_1 = arith.constant 0 : i32
    return %c0_i32, %c0_i32_0 : i32, i32
  }
  func.func @transform_6(%arg0: i32) -> (i32, i32) {
    %c0_i32 = arith.constant 0 : i32
    %c0_i32_0 = arith.constant 0 : i32
    %c0_i32_1 = arith.constant 0 : i32
    return %c0_i32, %c0_i32_0 : i32, i32
  }
  func.func @transform_7(%arg0: i32) -> (i32, i32) {
    %c0_i32 = arith.constant 0 : i32
    %c0_i32_0 = arith.constant 0 : i32
    return %arg0, %c0_i32 : i32, i32
  }
}

</mosaic_0001>

<llo_original>
// kernel: tpu_custom_call.1
$region0: #{tpu_custom_call.1}
  #allocation0 [shape = 'u32[]', space=smem, size = 0x4, offset = 0x4, fixed_abs, tag = 'smem constant byte address 0x4 - core index']
  #allocation1 [shape = 'u32[144,128]{1,0:T(1,128)}', space=vmem, size = 0x12000, scoped, tag = 'internal scratch']
  %s0 = inlined_call_operand.hbm [shape: bf16[32,64], index: 0, kind: input, shape index: {}]
  %s1 = inlined_call_operand.hbm [shape: bf16[64,128], index: 1, kind: input, shape index: {}]
  %s2 = inlined_call_operand.hbm [shape: bf16[384,128], index: 2, kind: input, shape index: {}]
  %s3 = inlined_call_operand.hbm [shape: bf16[128,512], index: 3, kind: input, shape index: {}]
  %s4 = inlined_call_operand.hbm [shape: f32[1,128], index: 4, kind: input, shape index: {}]
  %s5 = inlined_call_operand.hbm [shape: f32[1,128], index: 5, kind: input, shape index: {}]
  %s6 = inlined_call_operand.hbm [shape: f32[1,512], index: 6, kind: input, shape index: {}]
  %s7 = inlined_call_operand.hbm [shape: f32[32,512], index: 7, kind: output, shape index: {}]
  %s8 = sld [smem:[#allocation0]]
  $region66: #{tpu_custom_call.1} parent=0
    _
  %s10 = ssub.s32 1, %s8
  %s11 = scalar_select 0, %s10, %s8
  $region1: #{tpu_custom_call.1} parent=0
    #allocation2 [shape = 'u8[8192]{0}', space=vmem, size = 0x2000, scoped, tag = 'input window, operand 0, single buffered']
    #allocation3 [shape = 's32[1]{0}', space=sflag, size = 0x4, scoped, tag = 'scoped memory for tpu_custom_call.1']
    #allocation4 [shape = 's32[1]{0}', space=sflag, size = 0x4, scoped, tag = 'scoped memory for tpu_custom_call.1']
    #allocation5 [shape = 'u8[16384]{0}', space=vmem, size = 0x4000, scoped, tag = 'input window, operand 1, single buffered']
    #allocation6 [shape = 's32[1]{0}', space=sflag, size = 0x4, scoped, tag = 'scoped memory for tpu_custom_call.1']
    #allocation7 [shape = 'u8[98304]{0}', space=vmem, size = 0x18000, scoped, tag = 'input window, operand 2, single buffered']
    #allocation8 [shape = 'u8[131072]{0}', space=vmem, size = 0x20000, scoped, tag = 'input window, operand 3, single buffered']
    #allocation9 [shape = 's32[1]{0}', space=sflag, size = 0x4, scoped, tag = 'scoped memory for tpu_custom_call.1']
    #allocation10 [shape = 'u8[512]{0}', space=vmem, size = 0x400, scoped, tag = 'input window, operand 4, single buffered']
    #allocation11 [shape = 'u8[512]{0}', space=vmem, size = 0x400, scoped, tag = 'input window, operand 5, single buffered']
    #allocation12 [shape = 's32[1]{0}', space=sflag, size = 0x4, scoped, tag = 'scoped memory for tpu_custom_call.1']
    #allocation13 [shape = 'u8[2048]{0}', space=vmem, size = 0x800, scoped, tag = 'input window, operand 6, single buffered']
    #allocation14 [shape = 'u8[65536]{0}', space=vmem, size = 0x10000, scoped, tag = 'output window, operand 0, single buffered']
    %12 = vsyncpa [#allocation3], 0
    %13 = vsyncpa [#allocation6], 0
    %14 = vsyncpa [#allocation9], 0
    %15 = vsyncpa [#allocation12], 0
    %16 = vsyncpa [#allocation4], 0
    // Predicated region
    $region2: #{tpu_custom_call.1} parent=1 // pred_check
      _
    $region3: #{tpu_custom_call.1} parent=1 // pred_check_branch
      %18 = sbr.rel (0) target = $region5
    $region4: #{tpu_custom_call.1} parent=1 // pred_region
      %s20 = ssub.s32 256, 256
      %21 = vsyncadd [#allocation3], %s20
      %s22 = sshll.u32 [#allocation2], 4
      %s23 = int_to_ptr.vmem [resolvable:$true] %s22
      %28 = dma.hbm_to_vmem [thread:$0]  %s0, 256, %s23, [#allocation3], 64, 64, 4
    $region5: #{tpu_custom_call.1} parent=1 // pred_fallthru
      _
    // Predicated region
    $region6: #{tpu_custom_call.1} parent=1 // pred_check
      _
    $region7: #{tpu_custom_call.1} parent=1 // pred_check_branch
      %30 = sbr.rel (0) target = $region9
    $region8: #{tpu_custom_call.1} parent=1 // pred_region
      %s32 = ssub.s32 512, 512
      %33 = vsyncadd [#allocation6], %s32
      %s34 = sshll.u32 [#allocation5], 4
      %s35 = int_to_ptr.vmem [resolvable:$true] %s34
      %40 = dma.hbm_to_vmem [thread:$0]  %s1, 512, %s35, [#allocation6], 64, 64, 4
    $region9: #{tpu_custom_call.1} parent=1 // pred_fallthru
      _
    // Predicated region
    $region10: #{tpu_custom_call.1} parent=1 // pred_check
      _
    $region11: #{tpu_custom_call.1} parent=1 // pred_check_branch
      %42 = sbr.rel (0) target = $region13
    $region12: #{tpu_custom_call.1} parent=1 // pred_region
      %s44 = ssub.s32 3072, 3072
      %45 = vsyncadd [#allocation6], %s44
      %s46 = sshll.u32 [#allocation7], 4
      %s47 = int_to_ptr.vmem [resolvable:$true] %s46
      %52 = dma.hbm_to_vmem [thread:$0]  %s2, 3072, %s47, [#allocation6], 64, 64, 4
    $region13: #{tpu_custom_call.1} parent=1 // pred_fallthru
      _
    // Predicated region
    $region14: #{tpu_custom_call.1} parent=1 // pred_check
      _
    $region15: #{tpu_custom_call.1} parent=1 // pred_check_branch
      %54 = sbr.rel (0) target = $region17
    $region16: #{tpu_custom_call.1} parent=1 // pred_region
      %s56 = ssub.s32 4096, 4096
      %57 = vsyncadd [#allocation9], %s56
      %s58 = sshll.u32 [#allocation8], 4
      %s59 = int_to_ptr.vmem [resolvable:$true] %s58
      %64 = dma.hbm_to_vmem [thread:$0]  %s3, 4096, %s59, [#allocation9], 256, 256, 16
    $region17: #{tpu_custom_call.1} parent=1 // pred_fallthru
      _
    // Predicated region
    $region18: #{tpu_custom_call.1} parent=1 // pred_check
      _
    $region19: #{tpu_custom_call.1} parent=1 // pred_check_branch
      %66 = sbr.rel (0) target = $region21
    $region20: #{tpu_custom_call.1} parent=1 // pred_region
      %s68 = ssub.s32 16, 16
      %69 = vsyncadd [#allocation9], %s68
      %s71 = sshll.u32 [#allocation10], 4
      %s72 = int_to_ptr.vmem [resolvable:$true] %s71
      %74 = dma.hbm_to_vmem [thread:$0]  %s4, 16, %s72, [#allocation9]
    $region21: #{tpu_custom_call.1} parent=1 // pred_fallthru
      _
    // Predicated region
    $region22: #{tpu_custom_call.1} parent=1 // pred_check
      _
    $region23: #{tpu_custom_call.1} parent=1 // pred_check_branch
      %76 = sbr.rel (0) target = $region25
    $region24: #{tpu_custom_call.1} parent=1 // pred_region
      %s78 = ssub.s32 16, 16
      %79 = vsyncadd [#allocation12], %s78
      %s81 = sshll.u32 [#allocation11], 4
      %s82 = int_to_ptr.vmem [resolvable:$true] %s81
      %84 = dma.hbm_to_vmem [thread:$0]  %s5, 16, %s82, [#allocation12]
    $region25: #{tpu_custom_call.1} parent=1 // pred_fallthru
      _
    // Predicated region
    $region26: #{tpu_custom_call.1} parent=1 // pred_check
      _
    $region27: #{tpu_custom_call.1} parent=1 // pred_check_branch
      %86 = sbr.rel (0) target = $region29
    $region28: #{tpu_custom_call.1} parent=1 // pred_region
      %s88 = ssub.s32 64, 64
      %89 = vsyncadd [#allocation12], %s88
      %s91 = sshll.u32 [#allocation13], 4
      %s92 = int_to_ptr.vmem [resolvable:$true] %s91
      %94 = dma.hbm_to_vmem [thread:$0]  %s6, 64, %s92, [#allocation12]
    $region29: #{tpu_custom_call.1} parent=1 // pred_fallthru
      _
    // Predicated region
    $region30: #{tpu_custom_call.1} parent=1 // pred_check
      _
    $region31: #{tpu_custom_call.1} parent=1 // pred_check_branch
      %96 = sbr.rel (0) target = $region33
    $region32: #{tpu_custom_call.1} parent=1 // pred_region
      %97 = dma.done [#allocation3], 256
    $region33: #{tpu_custom_call.1} parent=1 // pred_fallthru
      _
    // Predicated region
    $region34: #{tpu_custom_call.1} parent=1 // pred_check
      _
    $region35: #{tpu_custom_call.1} parent=1 // pred_check_branch
      %99 = sbr.rel (0) target = $region37
    $region36: #{tpu_custom_call.1} parent=1 // pred_region
      %100 = dma.done [#allocation6], 512
    $region37: #{tpu_custom_call.1} parent=1 // pred_fallthru
      _
    // Predicated region
    $region38: #{tpu_custom_call.1} parent=1 // pred_check
      _
    $region39: #{tpu_custom_call.1} parent=1 // pred_check_branch
      %102 = sbr.rel (0) target = $region41
    $region40: #{tpu_custom_call.1} parent=1 // pred_region
      %103 = dma.done [#allocation6], 3072
    $region41: #{tpu_custom_call.1} parent=1 // pred_fallthru
      _
    // Predicated region
    $region42: #{tpu_custom_call.1} parent=1 // pred_check
      _
    $region43: #{tpu_custom_call.1} parent=1 // pred_check_branch
      %105 = sbr.rel (0) target = $region45
    $region44: #{tpu_custom_call.1} parent=1 // pred_region
      %106 = dma.done [#allocation9], 4096
    $region45: #{tpu_custom_call.1} parent=1 // pred_fallthru
      _
    // Predicated region
    $region46: #{tpu_custom_call.1} parent=1 // pred_check
      _
    $region47: #{tpu_custom_call.1} parent=1 // pred_check_branch
      %108 = sbr.rel (0) target = $region49
    $region48: #{tpu_custom_call.1} parent=1 // pred_region
      %109 = dma.done [#allocation9], 16
    $region49: #{tpu_custom_call.1} parent=1 // pred_fallthru
      _
    // Predicated region
    $region50: #{tpu_custom_call.1} parent=1 // pred_check
      _
    $region51: #{tpu_custom_call.1} parent=1 // pred_check_branch
      %111 = sbr.rel (0) target = $region53
    $region52: #{tpu_custom_call.1} parent=1 // pred_region
      %112 = dma.done [#allocation12], 16
    $region53: #{tpu_custom_call.1} parent=1 // pred_fallthru
      _
    // Predicated region
    $region54: #{tpu_custom_call.1} parent=1 // pred_check
      _
    $region55: #{tpu_custom_call.1} parent=1 // pred_check_branch
      %114 = sbr.rel (0) target = $region57
    $region56: #{tpu_custom_call.1} parent=1 // pred_region
      %115 = dma.done [#allocation12], 64
    $region57: #{tpu_custom_call.1} parent=1 // pred_fallthru
      _
    %v117 = vld [vmem:[#allocation2] sm:$0xf]
    %v118 = vld [vmem:[#allocation2 + $0x4] sm:$0xf]
    %v119 = vld [vmem:[#allocation2 + $0x8] sm:$0xf]
    %v120 = vld [vmem:[#allocation2 + $0xc] sm:$0xf]
    %v121 = vld [vmem:[#allocation5] sm:$0xf]
    %v122 = vld [vmem:[#allocation5 + $0x4] sm:$0xf]
    %v123 = vld [vmem:[#allocation5 + $0x8] sm:$0xf]
    %v124 = vld [vmem:[#allocation5 + $0xc] sm:$0xf]
    %v125 = vld [vmem:[#allocation5 + $0x10] sm:$0xf]
    %v126 = vld [vmem:[#allocation5 + $0x14] sm:$0xf]
    %v127 = vld [vmem:[#allocation5 + $0x18] sm:$0xf]
    %v128 = vld [vmem:[#allocation5 + $0x1c] sm:$0xf]
    %v129 = vld [vmem:[#allocation10] sm:$0x1]
    %v131 = vlaneseq
    %v132 = vshrl.u32 %v131, 7
    %v133 = vsub.s32 0, %v132
    %v134 = vrot.slane %v129, %v133
    %v140 = vunpack.c.l.b16 %v117
    %v141 = vunpack.c.l.b16 %v118
    %v142 = vunpack.c.l.b16 %v119
    %v143 = vunpack.c.l.b16 %v120
    %v144 = vpack.c.b16 %v141, %v140
    %v145 = vpack.c.b16 %v143, %v142
    %v154 = vunpack.c.l.b16 %v121
    %v155 = vunpack.c.l.b16 %v122
    %v156 = vunpack.c.l.b16 %v123
    %v157 = vunpack.c.l.b16 %v124
    %v158 = vunpack.c.l.b16 %v125
    %v159 = vunpack.c.l.b16 %v126
    %v160 = vunpack.c.l.b16 %v127
    %v161 = vunpack.c.l.b16 %v128
    %v162 = vpack.c.b16 %v155, %v154
    %v163 = vpack.c.b16 %v157, %v156
    %v164 = vpack.c.b16 %v159, %v158
    %v165 = vpack.c.b16 %v161, %v160
    %vm170 = vcmask 523264
    %v172 = vsel %vm170, %v144, 0
    %v175 = vsel %vm170, %v145, 0
    %177 = vmatprep.subr.bf16.mxu0 0
    %178 = vmatpush1.bf16.msra.mxu0 %v162
    %179 = vmatprep.subr.bf16.mxu0 0
    %180 = vmatpush1.bf16.msra.mxu0 %v163
    %181 = vmatprep.subr.bf16.mxu0 0
    %182 = vmatpush1.bf16.msra.mxu0 %v164
    %183 = vmatprep.subr.bf16.mxu0 0
    %184 = vmatpush1.bf16.msra.mxu0 %v165
    %185 = vmatprep.subr.bf16.mxu0 0
    %186 = vmatpush1.bf16.msra.mxu0 0
    %187 = vmatprep.subr.bf16.mxu0 0
    %188 = vmatpush1.bf16.msra.mxu0 0
    %189 = vmatprep.subr.bf16.mxu0 0
    %190 = vmatpush1.bf16.msra.mxu0 0
    %191 = vmatprep.subr.bf16.mxu0 0
    %192 = vmatpush1.bf16.msra.mxu0 0
    %193 = vmatprep.subr.bf16.mxu0 0
    %194 = vmatpush1.bf16.msra.mxu0 0
    %195 = vmatprep.subr.bf16.mxu0 0
    %196 = vmatpush1.bf16.msra.mxu0 0
    %197 = vmatprep.subr.bf16.mxu0 0
    %198 = vmatpush1.bf16.msra.mxu0 0
    %199 = vmatprep.subr.bf16.mxu0 0
    %200 = vmatpush1.bf16.msra.mxu0 0
    %201 = vmatprep.subr.bf16.mxu0 0
    %202 = vmatpush1.bf16.msra.mxu0 0
    %203 = vmatprep.subr.bf16.mxu0 0
    %204 = vmatpush1.bf16.msra.mxu0 0
    %205 = vmatprep.subr.bf16.mxu0 0
    %206 = vmatpush1.bf16.msra.mxu0 0
    %207 = vmatprep.subr.bf16.mxu0 0
    %208 = vmatpush1.bf16.msra.mxu0 0
    %209 = vmatprep.mubr.bf16.mxu0 0
    %210 = vmatmul.mubr.bf16.gmra.mrb[0].mxu0 %v172
    %v211 = vpop.f32.mrb[0].mxu0
    %v212 = vadd.f32 %v134, %v211
    %v213 = vpop.f32.mrb[0].mxu0
    %v214 = vpop.f32.mrb[0].mxu0
    %v215 = vadd.f32 %v134, %v214
    %v216 = vpop.f32.mrb[0].mxu0
    %217 = vmatprep.mubr.bf16.mxu0 0
    %218 = vmatmul.mubr.bf16.gmra.mrb[0].mxu0 %v175
    %v219 = vpop.f32.mrb[0].mxu0
    %v220 = vadd.f32 %v134, %v219
    %v221 = vpop.f32.mrb[0].mxu0
    %v222 = vpop.f32.mrb[0].mxu0
    %v223 = vadd.f32 %v134, %v222
    %v224 = vpop.f32.mrb[0].mxu0
    %225 = vdwg.mxu0
    %v226 = vmax.f32 %v212, 0.0
    %v227 = vmax.f32 %v215, 0.0
    %v228 = vmax.f32 %v220, 0.0
    %v229 = vmax.f32 %v223, 0.0
    %v230 = vlaneseq
    %v231 = vshrl.u32 %v230, 7
    %v232 = vadd.s32 %v231, 8
    %v233 = vadd.s32 %v231, 16
    %v234 = vadd.s32 %v231, 24
    %vm235 = vcmp.lt.s32.totalorder %v231, 0
    %v236 = vsub.s32 0, %v231
    %v237 = vsel %vm235, %v236, %v231
    %v238 = vshrl.u32 %v237, 4
    %v239 = vand.u32 %v237, 15
    %v240 = vsub.s32 0, %v239
    %v241 = vsel %vm235, %v240, %v239
    %vm242 = vcmp.lt.s32.totalorder %v232, 0
    %v243 = vsub.s32 0, %v232
    %v244 = vsel %vm242, %v243, %v232
    %v245 = vshrl.u32 %v244, 4
    %v246 = vand.u32 %v244, 15
    %v247 = vsub.s32 0, %v246
    %v248 = vsel %vm242, %v247, %v246
    %vm249 = vcmp.lt.s32.totalorder %v233, 0
    %v250 = vsub.s32 0, %v233
    %v251 = vsel %vm249, %v250, %v233
    %v252 = vshrl.u32 %v251, 4
    %v253 = vand.u32 %v251, 15
    %v254 = vsub.s32 0, %v253
    %v255 = vsel %vm249, %v254, %v253
    %vm256 = vcmp.lt.s32.totalorder %v234, 0
    %v257 = vsub.s32 0, %v234
    %v258 = vsel %vm256, %v257, %v234
    %v259 = vshrl.u32 %v258, 4
    %v260 = vand.u32 %v258, 15
    %v261 = vsub.s32 0, %v260
    %v262 = vsel %vm256, %v261, %v260
    %vm263 = vcmp.ne.s32.totalorder %v241, 0
    %vm264 = vcmp.ne.s32.totalorder %v248, 0
    %vm265 = vcmp.ne.s32.totalorder %v255, 0
    %vm266 = vcmp.ne.s32.totalorder %v262, 0
    %vm267 = vcmp.lt.s32.totalorder %v241, 0
    %vm268 = vcmp.lt.s32.totalorder %v248, 0
    %vm269 = vcmp.lt.s32.totalorder %v255, 0
    %vm270 = vcmp.lt.s32.totalorder %v262, 0
    %vm271 = vmand %vm267, %vm263
    %vm272 = vmand %vm268, %vm264
    %vm273 = vmand %vm269, %vm265
    %vm274 = vmand %vm270, %vm266
    %v275 = vadd.s32 %v241, 16
    %v276 = vadd.s32 %v248, 16
    %v277 = vadd.s32 %v255, 16
    %v278 = vadd.s32 %v262, 16
    %v279 = vsel %vm271, %v275, %v241
    %v280 = vsel %vm272, %v276, %v248
    %v281 = vsel %vm273, %v277, %v255
    %v282 = vsel %vm274, %v278, %v262
    %vm283 = vcmp.eq.s32.totalorder %v279, 0
    %vm284 = vcmp.eq.s32.totalorder %v280, 0
    %vm285 = vcmp.eq.s32.totalorder %v281, 0
    %vm286 = vcmp.eq.s32.totalorder %v282, 0
    %v287 = vrot.slane %v226, 7
    %v288 = vrot.slane %v227, 7
    %v289 = vrot.slane %v228, 7
    %v290 = vrot.slane %v229, 7
    %vm291 = vcmp.lt.s32.totalorder %v231, 1
    %v292 = vsel %vm291, %v289, %v290
    %v293 = vsel %vm291, %v288, %v289
    %v294 = vsel %vm291, %v287, %v288
    %v295 = vsel %vm291, %v290, %v287
    %v296 = vsel %vm283, 0.0, %v295
    %v297 = vsel %vm284, 0.0, %v294
    %v298 = vsel %vm285, 0.0, %v293
    %v299 = vsel %vm286, 0.0, %v292
    %vm300 = vcmp.eq.s32.totalorder %v279, 15
    %vm301 = vcmp.eq.s32.totalorder %v280, 15
    %vm302 = vcmp.eq.s32.totalorder %v281, 15
    %vm303 = vcmp.eq.s32.totalorder %v282, 15
    %v304 = vrot.slane %v226, 1
    %v305 = vrot.slane %v227, 1
    %v306 = vrot.slane %v228, 1
    %v307 = vrot.slane %v229, 1
    %vm308 = vcmp.lt.s32.totalorder %v231, 7
    %v309 = vsel %vm308, %v306, %v307
    %v310 = vsel %vm308, %v305, %v306
    %v311 = vsel %vm308, %v304, %v305
    %v312 = vsel %vm308, %v307, %v304
    %v313 = vsel %vm300, 0.0, %v311
    %v314 = vsel %vm301, 0.0, %v310
    %v315 = vsel %vm302, 0.0, %v309
    %v316 = vsel %vm303, 0.0, %v312
    %v317 = vpack.c.bf16 %v227, %v226
    %v318 = vpack.c.bf16 %v229, %v228
    %v319 = vpack.c.bf16 %v297, %v296
    %v320 = vpack.c.bf16 %v299, %v298
    %v321 = vpack.c.bf16 %v314, %v313
    %v322 = vpack.c.bf16 %v316, %v315
    %v323 = vld [vmem:[#allocation7] sm:$0xf]
    %v324 = vld [vmem:[#allocation7 + $0x4] sm:$0xf]
    %v325 = vld [vmem:[#allocation7 + $0x8] sm:$0xf]
    %v326 = vld [vmem:[#allocation7 + $0xc] sm:$0xf]
    %v327 = vld [vmem:[#allocation7 + $0x10] sm:$0xf]
    %v328 = vld [vmem:[#allocation7 + $0x14] sm:$0xf]
    %v329 = vld [vmem:[#allocation7 + $0x18] sm:$0xf]
    %v330 = vld [vmem:[#allocation7 + $0x1c] sm:$0xf]
    %v331 = vld [vmem:[#allocation7 + $0x20] sm:$0xf]
    %v332 = vld [vmem:[#allocation7 + $0x24] sm:$0xf]
    %v333 = vld [vmem:[#allocation7 + $0x28] sm:$0xf]
    %v334 = vld [vmem:[#allocation7 + $0x2c] sm:$0xf]
    %v335 = vld [vmem:[#allocation7 + $0x30] sm:$0xf]
    %v336 = vld [vmem:[#allocation7 + $0x34] sm:$0xf]
    %v337 = vld [vmem:[#allocation7 + $0x38] sm:$0xf]
    %v338 = vld [vmem:[#allocation7 + $0x3c] sm:$0xf]
    %v339 = vld [vmem:[#allocation7 + $0x40] sm:$0xf]
    %v340 = vld [vmem:[#allocation7 + $0x44] sm:$0xf]
    %v341 = vld [vmem:[#allocation7 + $0x48] sm:$0xf]
    %v342 = vld [vmem:[#allocation7 + $0x4c] sm:$0xf]
    %v343 = vld [vmem:[#allocation7 + $0x50] sm:$0xf]
    %v344 = vld [vmem:[#allocation7 + $0x54] sm:$0xf]
    %v345 = vld [vmem:[#allocation7 + $0x58] sm:$0xf]
    %v346 = vld [vmem:[#allocation7 + $0x5c] sm:$0xf]
    %v347 = vld [vmem:[#allocation7 + $0x60] sm:$0xf]
    %v348 = vld [vmem:[#allocation7 + $0x64] sm:$0xf]
    %v349 = vld [vmem:[#allocation7 + $0x68] sm:$0xf]
    %v350 = vld [vmem:[#allocation7 + $0x6c] sm:$0xf]
    %v351 = vld [vmem:[#allocation7 + $0x70] sm:$0xf]
    %v352 = vld [vmem:[#allocation7 + $0x74] sm:$0xf]
    %v353 = vld [vmem:[#allocation7 + $0x78] sm:$0xf]
    %v354 = vld [vmem:[#allocation7 + $0x7c] sm:$0xf]
    %v371 = vunpack.c.l.b16 %v339
    %v372 = vunpack.c.l.b16 %v340
    %v373 = vunpack.c.l.b16 %v341
    %v374 = vunpack.c.l.b16 %v342
    %v375 = vunpack.c.l.b16 %v343
    %v376 = vunpack.c.l.b16 %v344
    %v377 = vunpack.c.l.b16 %v345
    %v378 = vunpack.c.l.b16 %v346
    %v379 = vunpack.c.l.b16 %v347
    %v380 = vunpack.c.l.b16 %v348
    %v381 = vunpack.c.l.b16 %v349
    %v382 = vunpack.c.l.b16 %v350
    %v383 = vunpack.c.l.b16 %v351
    %v384 = vunpack.c.l.b16 %v352
    %v385 = vunpack.c.l.b16 %v353
    %v386 = vunpack.c.l.b16 %v354
    %v387 = vpack.c.b16 %v372, %v371
    %v388 = vpack.c.b16 %v374, %v373
    %v389 = vpack.c.b16 %v376, %v375
    %v390 = vpack.c.b16 %v378, %v377
    %v391 = vpack.c.b16 %v380, %v379
    %v392 = vpack.c.b16 %v382, %v381
    %v393 = vpack.c.b16 %v384, %v383
    %v394 = vpack.c.b16 %v386, %v385
    %403 = vmatprep.subr.bf16.mxu0 0
    %404 = vmatpush1.bf16.msra.mxu0 %v387
    %405 = vmatprep.subr.bf16.mxu0 0
    %406 = vmatpush1.bf16.msra.mxu0 %v388
    %407 = vmatprep.subr.bf16.mxu0 0
    %408 = vmatpush1.bf16.msra.mxu0 %v389
    %409 = vmatprep.subr.bf16.mxu0 0
    %410 = vmatpush1.bf16.msra.mxu0 %v390
    %411 = vmatprep.subr.bf16.mxu0 0
    %412 = vmatpush1.bf16.msra.mxu0 %v391
    %413 = vmatprep.subr.bf16.mxu0 0
    %414 = vmatpush1.bf16.msra.mxu0 %v392
    %415 = vmatprep.subr.bf16.mxu0 0
    %416 = vmatpush1.bf16.msra.mxu0 %v393
    %417 = vmatprep.subr.bf16.mxu0 0
    %418 = vmatpush1.bf16.msra.mxu0 %v394
    %419 = vmatprep.subr.bf16.mxu0 0
    %420 = vmatpush1.bf16.msra.mxu0 0
    %421 = vmatprep.subr.bf16.mxu0 0
    %422 = vmatpush1.bf16.msra.mxu0 0
    %423 = vmatprep.subr.bf16.mxu0 0
    %424 = vmatpush1.bf16.msra.mxu0 0
    %425 = vmatprep.subr.bf16.mxu0 0
    %426 = vmatpush1.bf16.msra.mxu0 0
    %427 = vmatprep.subr.bf16.mxu0 0
    %428 = vmatpush1.bf16.msra.mxu0 0
    %429 = vmatprep.subr.bf16.mxu0 0
    %430 = vmatpush1.bf16.msra.mxu0 0
    %431 = vmatprep.subr.bf16.mxu0 0
    %432 = vmatpush1.bf16.msra.mxu0 0
    %433 = vmatprep.subr.bf16.mxu0 0
    %434 = vmatpush1.bf16.msra.mxu0 0
    %435 = vmatprep.mubr.bf16.mxu0 0
    %436 = vmatmul.mubr.bf16.gmra.mrb[0].mxu0 %v317
    %v437 = vpop.f32.mrb[0].mxu0
    %v438 = vadd.f32 0.0, %v437
    %v439 = vpop.f32.mrb[0].mxu0
    %v440 = vpop.f32.mrb[0].mxu0
    %v441 = vadd.f32 0.0, %v440
    %v442 = vpop.f32.mrb[0].mxu0
    %443 = vmatprep.mubr.bf16.mxu0 0
    %444 = vmatmul.mubr.bf16.gmra.mrb[0].mxu0 %v318
    %v445 = vpop.f32.mrb[0].mxu0
    %v446 = vadd.f32 0.0, %v445
    %v447 = vpop.f32.mrb[0].mxu0
    %v448 = vpop.f32.mrb[0].mxu0
    %v449 = vadd.f32 0.0, %v448
    %v450 = vpop.f32.mrb[0].mxu0
    %451 = vdwg.mxu0
    %v468 = vunpack.c.l.b16 %v323
    %v469 = vunpack.c.l.b16 %v324
    %v470 = vunpack.c.l.b16 %v325
    %v471 = vunpack.c.l.b16 %v326
    %v472 = vunpack.c.l.b16 %v327
    %v473 = vunpack.c.l.b16 %v328
    %v474 = vunpack.c.l.b16 %v329
    %v475 = vunpack.c.l.b16 %v330
    %v476 = vunpack.c.l.b16 %v331
    %v477 = vunpack.c.l.b16 %v332
    %v478 = vunpack.c.l.b16 %v333
    %v479 = vunpack.c.l.b16 %v334
    %v480 = vunpack.c.l.b16 %v335
    %v481 = vunpack.c.l.b16 %v336
    %v482 = vunpack.c.l.b16 %v337
    %v483 = vunpack.c.l.b16 %v338
    %v484 = vpack.c.b16 %v469, %v468
    %v485 = vpack.c.b16 %v471, %v470
    %v486 = vpack.c.b16 %v473, %v472
    %v487 = vpack.c.b16 %v475, %v474
    %v488 = vpack.c.b16 %v477, %v476
    %v489 = vpack.c.b16 %v479, %v478
    %v490 = vpack.c.b16 %v481, %v480
    %v491 = vpack.c.b16 %v483, %v482
    %500 = vmatprep.subr.bf16.mxu0 0
    %501 = vmatpush1.bf16.msra.mxu0 %v484
    %502 = vmatprep.subr.bf16.mxu0 0
    %503 = vmatpush1.bf16.msra.mxu0 %v485
    %504 = vmatprep.subr.bf16.mxu0 0
    %505 = vmatpush1.bf16.msra.mxu0 %v486
    %506 = vmatprep.subr.bf16.mxu0 0
    %507 = vmatpush1.bf16.msra.mxu0 %v487
    %508 = vmatprep.subr.bf16.mxu0 0
    %509 = vmatpush1.bf16.msra.mxu0 %v488
    %510 = vmatprep.subr.bf16.mxu0 0
    %511 = vmatpush1.bf16.msra.mxu0 %v489
    %512 = vmatprep.subr.bf16.mxu0 0
    %513 = vmatpush1.bf16.msra.mxu0 %v490
    %514 = vmatprep.subr.bf16.mxu0 0
    %515 = vmatpush1.bf16.msra.mxu0 %v491
    %516 = vmatprep.subr.bf16.mxu0 0
    %517 = vmatpush1.bf16.msra.mxu0 0
    %518 = vmatprep.subr.bf16.mxu0 0
    %519 = vmatpush1.bf16.msra.mxu0 0
    %520 = vmatprep.subr.bf16.mxu0 0
    %521 = vmatpush1.bf16.msra.mxu0 0
    %522 = vmatprep.subr.bf16.mxu0 0
    %523 = vmatpush1.bf16.msra.mxu0 0
    %524 = vmatprep.subr.bf16.mxu0 0
    %525 = vmatpush1.bf16.msra.mxu0 0
    %526 = vmatprep.subr.bf16.mxu0 0
    %527 = vmatpush1.bf16.msra.mxu0 0
    %528 = vmatprep.subr.bf16.mxu0 0
    %529 = vmatpush1.bf16.msra.mxu0 0
    %530 = vmatprep.subr.bf16.mxu0 0
    %531 = vmatpush1.bf16.msra.mxu0 0
    %532 = vmatprep.mubr.bf16.mxu0 0
    %533 = vmatmul.mubr.bf16.gmra.mrb[0].mxu0 %v319
    %v534 = vpop.f32.mrb[0].mxu0
    %v535 = vadd.f32 %v438, %v534
    %v536 = vpop.f32.mrb[0].mxu0
    %v537 = vpop.f32.mrb[0].mxu0
    %v538 = vadd.f32 %v441, %v537
    %v539 = vpop.f32.mrb[0].mxu0
    %540 = vmatprep.mubr.bf16.mxu0 0
    %541 = vmatmul.mubr.bf16.gmra.mrb[0].mxu0 %v320
    %v542 = vpop.f32.mrb[0].mxu0
    %v543 = vadd.f32 %v446, %v542
    %v544 = vpop.f32.mrb[0].mxu0
    %v545 = vpop.f32.mrb[0].mxu0
    %v546 = vadd.f32 %v449, %v545
    %v547 = vpop.f32.mrb[0].mxu0
    %548 = vdwg.mxu0
    %v549 = vld [vmem:[#allocation7 + $0x80] sm:$0xf]
    %v550 = vld [vmem:[#allocation7 + $0x84] sm:$0xf]
    %v551 = vld [vmem:[#allocation7 + $0x88] sm:$0xf]
    %v552 = vld [vmem:[#allocation7 + $0x8c] sm:$0xf]
    %v553 = vld [vmem:[#allocation7 + $0x90] sm:$0xf]
    %v554 = vld [vmem:[#allocation7 + $0x94] sm:$0xf]
    %v555 = vld [vmem:[#allocation7 + $0x98] sm:$0xf]
    %v556 = vld [vmem:[#allocation7 + $0x9c] sm:$0xf]
    %v557 = vld [vmem:[#allocation7 + $0xa0] sm:$0xf]
    %v558 = vld [vmem:[#allocation7 + $0xa4] sm:$0xf]
    %v559 = vld [vmem:[#allocation7 + $0xa8] sm:$0xf]
    %v560 = vld [vmem:[#allocation7 + $0xac] sm:$0xf]
    %v561 = vld [vmem:[#allocation7 + $0xb0] sm:$0xf]
    %v562 = vld [vmem:[#allocation7 + $0xb4] sm:$0xf]
    %v563 = vld [vmem:[#allocation7 + $0xb8] sm:$0xf]
    %v564 = vld [vmem:[#allocation7 + $0xbc] sm:$0xf]
    %v581 = vunpack.c.l.b16 %v549
    %v582 = vunpack.c.l.b16 %v550
    %v583 = vunpack.c.l.b16 %v551
    %v584 = vunpack.c.l.b16 %v552
    %v585 = vunpack.c.l.b16 %v553
    %v586 = vunpack.c.l.b16 %v554
    %v587 = vunpack.c.l.b16 %v555
    %v588 = vunpack.c.l.b16 %v556
    %v589 = vunpack.c.l.b16 %v557
    %v590 = vunpack.c.l.b16 %v558
    %v591 = vunpack.c.l.b16 %v559
    %v592 = vunpack.c.l.b16 %v560
    %v593 = vunpack.c.l.b16 %v561
    %v594 = vunpack.c.l.b16 %v562
    %v595 = vunpack.c.l.b16 %v563
    %v596 = vunpack.c.l.b16 %v564
    %v597 = vpack.c.b16 %v582, %v581
    %v598 = vpack.c.b16 %v584, %v583
    %v599 = vpack.c.b16 %v586, %v585
    %v600 = vpack.c.b16 %v588, %v587
    %v601 = vpack.c.b16 %v590, %v589
    %v602 = vpack.c.b16 %v592, %v591
    %v603 = vpack.c.b16 %v594, %v593
    %v604 = vpack.c.b16 %v596, %v595
    %613 = vmatprep.subr.bf16.mxu0 0
    %614 = vmatpush1.bf16.msra.mxu0 %v597
    %615 = vmatprep.subr.bf16.mxu0 0
    %616 = vmatpush1.bf16.msra.mxu0 %v598
    %617 = vmatprep.subr.bf16.mxu0 0
    %618 = vmatpush1.bf16.msra.mxu0 %v599
    %619 = vmatprep.subr.bf16.mxu0 0
    %620 = vmatpush1.bf16.msra.mxu0 %v600
    %621 = vmatprep.subr.bf16.mxu0 0
    %622 = vmatpush1.bf16.msra.mxu0 %v601
    %623 = vmatprep.subr.bf16.mxu0 0
    %624 = vmatpush1.bf16.msra.mxu0 %v602
    %625 = vmatprep.subr.bf16.mxu0 0
    %626 = vmatpush1.bf16.msra.mxu0 %v603
    %627 = vmatprep.subr.bf16.mxu0 0
    %628 = vmatpush1.bf16.msra.mxu0 %v604
    %629 = vmatprep.subr.bf16.mxu0 0
    %630 = vmatpush1.bf16.msra.mxu0 0
    %631 = vmatprep.subr.bf16.mxu0 0
    %632 = vmatpush1.bf16.msra.mxu0 0
    %633 = vmatprep.subr.bf16.mxu0 0
    %634 = vmatpush1.bf16.msra.mxu0 0
    %635 = vmatprep.subr.bf16.mxu0 0
    %636 = vmatpush1.bf16.msra.mxu0 0
    %637 = vmatprep.subr.bf16.mxu0 0
    %638 = vmatpush1.bf16.msra.mxu0 0
    %639 = vmatprep.subr.bf16.mxu0 0
    %640 = vmatpush1.bf16.msra.mxu0 0
    %641 = vmatprep.subr.bf16.mxu0 0
    %642 = vmatpush1.bf16.msra.mxu0 0
    %643 = vmatprep.subr.bf16.mxu0 0
    %644 = vmatpush1.bf16.msra.mxu0 0
    %645 = vmatprep.mubr.bf16.mxu0 0
    %646 = vmatmul.mubr.bf16.gmra.mrb[0].mxu0 %v321
    %v647 = vpop.f32.mrb[0].mxu0
    %v648 = vadd.f32 0.0, %v647
    %v649 = vpop.f32.mrb[0].mxu0
    %v650 = vpop.f32.mrb[0].mxu0
    %v651 = vadd.f32 0.0, %v650
    %v652 = vpop.f32.mrb[0].mxu0
    %653 = vmatprep.mubr.bf16.mxu0 0
    %654 = vmatmul.mubr.bf16.gmra.mrb[0].mxu0 %v322
    %v655 = vpop.f32.mrb[0].mxu0
    %v656 = vadd.f32 0.0, %v655
    %v657 = vpop.f32.mrb[0].mxu0
    %v658 = vpop.f32.mrb[0].mxu0
    %v659 = vadd.f32 0.0, %v658
    %v660 = vpop.f32.mrb[0].mxu0
    %661 = vdwg.mxu0
    %v662 = vadd.f32 %v535, %v648
    %v663 = vadd.f32 %v538, %v651
    %v664 = vadd.f32 %v543, %v656
    %v665 = vadd.f32 %v546, %v659
    %v666 = vld [vmem:[#allocation11] sm:$0x1]
    %v668 = vlaneseq
    %v669 = vshrl.u32 %v668, 7
    %v670 = vsub.s32 0, %v669
    %v671 = vrot.slane %v666, %v670
    %v673 = vadd.f32 %v662, %v671
    %v674 = vadd.f32 %v663, %v671
    %v675 = vadd.f32 %v664, %v671
    %v676 = vadd.f32 %v665, %v671
    %v677 = vmax.f32 %v673, 0.0
    %v678 = vmax.f32 %v674, 0.0
    %v679 = vmax.f32 %v675, 0.0
    %v680 = vmax.f32 %v676, 0.0
    %v681 = vpack.c.bf16 %v678, %v677
    %v682 = vpack.c.bf16 %v680, %v679
    %v683 = vld [vmem:[#allocation8] sm:$0xff]
    %v684 = vld [vmem:[#allocation8 + $0x8] sm:$0xff]
    %v685 = vld [vmem:[#allocation8 + $0x10] sm:$0xff]
    %v686 = vld [vmem:[#allocation8 + $0x18] sm:$0xff]
    %v687 = vld [vmem:[#allocation8 + $0x20] sm:$0xff]
    %v688 = vld [vmem:[#allocation8 + $0x28] sm:$0xff]
    %v689 = vld [vmem:[#allocation8 + $0x30] sm:$0xff]
    %v690 = vld [vmem:[#allocation8 + $0x38] sm:$0xff]
    %v691 = vld [vmem:[#allocation8 + $0x40] sm:$0xff]
    %v692 = vld [vmem:[#allocation8 + $0x48] sm:$0xff]
    %v693 = vld [vmem:[#allocation8 + $0x50] sm:$0xff]
    %v694 = vld [vmem:[#allocation8 + $0x58] sm:$0xff]
    %v695 = vld [vmem:[#allocation8 + $0x60] sm:$0xff]
    %v696 = vld [vmem:[#allocation8 + $0x68] sm:$0xff]
    %v697 = vld [vmem:[#allocation8 + $0x70] sm:$0xff]
    %v698 = vld [vmem:[#allocation8 + $0x78] sm:$0xff]
    %v699 = vld [vmem:[#allocation8 + $0x80] sm:$0xff]
    %v700 = vld [vmem:[#allocation8 + $0x88] sm:$0xff]
    %v701 = vld [vmem:[#allocation8 + $0x90] sm:$0xff]
    %v702 = vld [vmem:[#allocation8 + $0x98] sm:$0xff]
    %v703 = vld [vmem:[#allocation8 + $0xa0] sm:$0xff]
    %v704 = vld [vmem:[#allocation8 + $0xa8] sm:$0xff]
    %v705 = vld [vmem:[#allocation8 + $0xb0] sm:$0xff]
    %v706 = vld [vmem:[#allocation8 + $0xb8] sm:$0xff]
    %v707 = vld [vmem:[#allocation8 + $0xc0] sm:$0xff]
    %v708 = vld [vmem:[#allocation8 + $0xc8] sm:$0xff]
    %v709 = vld [vmem:[#allocation8 + $0xd0] sm:$0xff]
    %v710 = vld [vmem:[#allocation8 + $0xd8] sm:$0xff]
    %v711 = vld [vmem:[#allocation8 + $0xe0] sm:$0xff]
    %v712 = vld [vmem:[#allocation8 + $0xe8] sm:$0xff]
    %v713 = vld [vmem:[#allocation8 + $0xf0] sm:$0xff]
    %v714 = vld [vmem:[#allocation8 + $0xf8] sm:$0xff]
    %v715 = vld [vmem:[#allocation13] sm:$0xf]
    %v717 = vlaneseq
    %v718 = vshrl.u32 %v717, 7
    %v719 = vsub.s32 0, %v718
    %v720 = vrot.slane %v715, %v719
    %v721 = vlaneseq
    %v722 = vshrl.u32 %v721, 7
    %v723 = vsub.s32 1, %v722
    %v724 = vrot.slane %v715, %v723
    %v725 = vlaneseq
    %v726 = vshrl.u32 %v725, 7
    %v727 = vsub.s32 2, %v726
    %v728 = vrot.slane %v715, %v727
    %v729 = vlaneseq
    %v730 = vshrl.u32 %v729, 7
    %v731 = vsub.s32 3, %v730
    %v732 = vrot.slane %v715, %v731
    %v769 = vunpack.c.l.b16 %v683
    %v770 = vunpack.c.h.b16 %v683
    %v771 = vunpack.c.l.b16 %v684
    %v772 = vunpack.c.h.b16 %v684
    %v773 = vunpack.c.l.b16 %v685
    %v774 = vunpack.c.h.b16 %v685
    %v775 = vunpack.c.l.b16 %v686
    %v776 = vunpack.c.h.b16 %v686
    %v777 = vunpack.c.l.b16 %v687
    %v778 = vunpack.c.h.b16 %v687
    %v779 = vunpack.c.l.b16 %v688
    %v780 = vunpack.c.h.b16 %v688
    %v781 = vunpack.c.l.b16 %v689
    %v782 = vunpack.c.h.b16 %v689
    %v783 = vunpack.c.l.b16 %v690
    %v784 = vunpack.c.h.b16 %v690
    %v785 = vunpack.c.l.b16 %v691
    %v786 = vunpack.c.h.b16 %v691
    %v787 = vunpack.c.l.b16 %v692
    %v788 = vunpack.c.h.b16 %v692
    %v789 = vunpack.c.l.b16 %v693
    %v790 = vunpack.c.h.b16 %v693
    %v791 = vunpack.c.l.b16 %v694
    %v792 = vunpack.c.h.b16 %v694
    %v793 = vunpack.c.l.b16 %v695
    %v794 = vunpack.c.h.b16 %v695
    %v795 = vunpack.c.l.b16 %v696
    %v796 = vunpack.c.h.b16 %v696
    %v797 = vunpack.c.l.b16 %v697
    %v798 = vunpack.c.h.b16 %v697
    %v799 = vunpack.c.l.b16 %v698
    %v800 = vunpack.c.h.b16 %v698
    %v801 = vunpack.c.l.b16 %v699
    %v802 = vunpack.c.h.b16 %v699
    %v803 = vunpack.c.l.b16 %v700
    %v804 = vunpack.c.h.b16 %v700
    %v805 = vunpack.c.l.b16 %v701
    %v806 = vunpack.c.h.b16 %v701
    %v807 = vunpack.c.l.b16 %v702
    %v808 = vunpack.c.h.b16 %v702
    %v809 = vunpack.c.l.b16 %v703
    %v810 = vunpack.c.h.b16 %v703
    %v811 = vunpack.c.l.b16 %v704
    %v812 = vunpack.c.h.b16 %v704
    %v813 = vunpack.c.l.b16 %v705
    %v814 = vunpack.c.h.b16 %v705
    %v815 = vunpack.c.l.b16 %v706
    %v816 = vunpack.c.h.b16 %v706
    %v817 = vunpack.c.l.b16 %v707
    %v818 = vunpack.c.h.b16 %v707
    %v819 = vunpack.c.l.b16 %v708
    %v820 = vunpack.c.h.b16 %v708
    %v821 = vunpack.c.l.b16 %v709
    %v822 = vunpack.c.h.b16 %v709
    %v823 = vunpack.c.l.b16 %v710
    %v824 = vunpack.c.h.b16 %v710
    %v825 = vunpack.c.l.b16 %v711
    %v826 = vunpack.c.h.b16 %v711
    %v827 = vunpack.c.l.b16 %v712
    %v828 = vunpack.c.h.b16 %v712
    %v829 = vunpack.c.l.b16 %v713
    %v830 = vunpack.c.h.b16 %v713
    %v831 = vunpack.c.l.b16 %v714
    %v832 = vunpack.c.h.b16 %v714
    %v833 = vpack.c.b16 %v773, %v769
    %v834 = vpack.c.b16 %v774, %v770
    %v835 = vpack.c.b16 %v775, %v771
    %v836 = vpack.c.b16 %v776, %v772
    %v837 = vpack.c.b16 %v781, %v777
    %v838 = vpack.c.b16 %v782, %v778
    %v839 = vpack.c.b16 %v783, %v779
    %v840 = vpack.c.b16 %v784, %v780
    %v841 = vpack.c.b16 %v789, %v785
    %v842 = vpack.c.b16 %v790, %v786
    %v843 = vpack.c.b16 %v791, %v787
    %v844 = vpack.c.b16 %v792, %v788
    %v845 = vpack.c.b16 %v797, %v793
    %v846 = vpack.c.b16 %v798, %v794
    %v847 = vpack.c.b16 %v799, %v795
    %v848 = vpack.c.b16 %v800, %v796
    %v849 = vpack.c.b16 %v805, %v801
    %v850 = vpack.c.b16 %v806, %v802
    %v851 = vpack.c.b16 %v807, %v803
    %v852 = vpack.c.b16 %v808, %v804
    %v853 = vpack.c.b16 %v813, %v809
    %v854 = vpack.c.b16 %v814, %v810
    %v855 = vpack.c.b16 %v815, %v811
    %v856 = vpack.c.b16 %v816, %v812
    %v857 = vpack.c.b16 %v821, %v817
    %v858 = vpack.c.b16 %v822, %v818
    %v859 = vpack.c.b16 %v823, %v819
    %v860 = vpack.c.b16 %v824, %v820
    %v861 = vpack.c.b16 %v829, %v825
    %v862 = vpack.c.b16 %v830, %v826
    %v863 = vpack.c.b16 %v831, %v827
    %v864 = vpack.c.b16 %v832, %v828
    %897 = vmatprep.subr.bf16.mxu0 %v834
    %898 = vmatpush1.bf16.msra.mxu0 %v833
    %899 = vmatprep.subr.bf16.mxu0 %v838
    %900 = vmatpush1.bf16.msra.mxu0 %v837
    %901 = vmatprep.subr.bf16.mxu0 %v842
    %902 = vmatpush1.bf16.msra.mxu0 %v841
    %903 = vmatprep.subr.bf16.mxu0 %v846
    %904 = vmatpush1.bf16.msra.mxu0 %v845
    %905 = vmatprep.subr.bf16.mxu0 %v850
    %906 = vmatpush1.bf16.msra.mxu0 %v849
    %907 = vmatprep.subr.bf16.mxu0 %v854
    %908 = vmatpush1.bf16.msra.mxu0 %v853
    %909 = vmatprep.subr.bf16.mxu0 %v858
    %910 = vmatpush1.bf16.msra.mxu0 %v857
    %911 = vmatprep.subr.bf16.mxu0 %v862
    %912 = vmatpush1.bf16.msra.mxu0 %v861
    %913 = vmatprep.subr.bf16.mxu0 0
    %914 = vmatpush1.bf16.msra.mxu0 0
    %915 = vmatprep.subr.bf16.mxu0 0
    %916 = vmatpush1.bf16.msra.mxu0 0
    %917 = vmatprep.subr.bf16.mxu0 0
    %918 = vmatpush1.bf16.msra.mxu0 0
    %919 = vmatprep.subr.bf16.mxu0 0
    %920 = vmatpush1.bf16.msra.mxu0 0
    %921 = vmatprep.subr.bf16.mxu0 0
    %922 = vmatpush1.bf16.msra.mxu0 0
    %923 = vmatprep.subr.bf16.mxu0 0
    %924 = vmatpush1.bf16.msra.mxu0 0
    %925 = vmatprep.subr.bf16.mxu0 0
    %926 = vmatpush1.bf16.msra.mxu0 0
    %927 = vmatprep.subr.bf16.mxu0 0
    %928 = vmatpush1.bf16.msra.mxu0 0
    %929 = vmatprep.mubr.bf16.mxu0 0
    %930 = vmatmul.mubr.bf16.gmra.mrb[0].mxu0 %v681
    %v931 = vpop.f32.mrb[0].mxu0
    %v932 = vadd.f32 %v720, %v931
    %v933 = vpop.f32.mrb[0].mxu0
    %v934 = vadd.f32 %v724, %v933
    %v935 = vpop.f32.mrb[0].mxu0
    %v936 = vadd.f32 %v720, %v935
    %v937 = vpop.f32.mrb[0].mxu0
    %v938 = vadd.f32 %v724, %v937
    %939 = vmatprep.mubr.bf16.mxu0 0
    %940 = vmatmul.mubr.bf16.gmra.mrb[0].mxu0 %v682
    %v941 = vpop.f32.mrb[0].mxu0
    %v942 = vadd.f32 %v720, %v941
    %v943 = vpop.f32.mrb[0].mxu0
    %v944 = vadd.f32 %v724, %v943
    %v945 = vpop.f32.mrb[0].mxu0
    %v946 = vadd.f32 %v720, %v945
    %v947 = vpop.f32.mrb[0].mxu0
    %v948 = vadd.f32 %v724, %v947
    %949 = vdwg.mxu0
    %950 = vmatprep.subr.bf16.mxu0 %v836
    %951 = vmatpush1.bf16.msra.mxu0 %v835
    %952 = vmatprep.subr.bf16.mxu0 %v840
    %953 = vmatpush1.bf16.msra.mxu0 %v839
    %954 = vmatprep.subr.bf16.mxu0 %v844
    %955 = vmatpush1.bf16.msra.mxu0 %v843
    %956 = vmatprep.subr.bf16.mxu0 %v848
    %957 = vmatpush1.bf16.msra.mxu0 %v847
    %958 = vmatprep.subr.bf16.mxu0 %v852
    %959 = vmatpush1.bf16.msra.mxu0 %v851
    %960 = vmatprep.subr.bf16.mxu0 %v856
    %961 = vmatpush1.bf16.msra.mxu0 %v855
    %962 = vmatprep.subr.bf16.mxu0 %v860
    %963 = vmatpush1.bf16.msra.mxu0 %v859
    %964 = vmatprep.subr.bf16.mxu0 %v864
    %965 = vmatpush1.bf16.msra.mxu0 %v863
    %966 = vmatprep.subr.bf16.mxu0 0
    %967 = vmatpush1.bf16.msra.mxu0 0
    %968 = vmatprep.subr.bf16.mxu0 0
    %969 = vmatpush1.bf16.msra.mxu0 0
    %970 = vmatprep.subr.bf16.mxu0 0
    %971 = vmatpush1.bf16.msra.mxu0 0
    %972 = vmatprep.subr.bf16.mxu0 0
    %973 = vmatpush1.bf16.msra.mxu0 0
    %974 = vmatprep.subr.bf16.mxu0 0
    %975 = vmatpush1.bf16.msra.mxu0 0
    %976 = vmatprep.subr.bf16.mxu0 0
    %977 = vmatpush1.bf16.msra.mxu0 0
    %978 = vmatprep.subr.bf16.mxu0 0
    %979 = vmatpush1.bf16.msra.mxu0 0
    %980 = vmatprep.subr.bf16.mxu0 0
    %981 = vmatpush1.bf16.msra.mxu0 0
    %982 = vmatprep.mubr.bf16.mxu0 0
    %983 = vmatmul.mubr.bf16.gmra.mrb[0].mxu0 %v681
    %v984 = vpop.f32.mrb[0].mxu0
    %v985 = vadd.f32 %v728, %v984
    %v986 = vpop.f32.mrb[0].mxu0
    %v987 = vadd.f32 %v732, %v986
    %v988 = vpop.f32.mrb[0].mxu0
    %v989 = vadd.f32 %v728, %v988
    %v990 = vpop.f32.mrb[0].mxu0
    %v991 = vadd.f32 %v732, %v990
    %992 = vmatprep.mubr.bf16.mxu0 0
    %993 = vmatmul.mubr.bf16.gmra.mrb[0].mxu0 %v682
    %v994 = vpop.f32.mrb[0].mxu0
    %v995 = vadd.f32 %v728, %v994
    %v996 = vpop.f32.mrb[0].mxu0
    %v997 = vadd.f32 %v732, %v996
    %v998 = vpop.f32.mrb[0].mxu0
    %v999 = vadd.f32 %v728, %v998
    %v1000 = vpop.f32.mrb[0].mxu0
    %v1001 = vadd.f32 %v732, %v1000
    %1002 = vdwg.mxu0
    %v1003 = vmax.f32 %v932, 0.0
    %v1004 = vmax.f32 %v934, 0.0
    %v1005 = vmax.f32 %v985, 0.0
    %v1006 = vmax.f32 %v987, 0.0
    %v1007 = vmax.f32 %v936, 0.0
    %v1008 = vmax.f32 %v938, 0.0
    %v1009 = vmax.f32 %v989, 0.0
    %v1010 = vmax.f32 %v991, 0.0
    %v1011 = vmax.f32 %v942, 0.0
    %v1012 = vmax.f32 %v944, 0.0
    %v1013 = vmax.f32 %v995, 0.0
    %v1014 = vmax.f32 %v997, 0.0
    %v1015 = vmax.f32 %v946, 0.0
    %v1016 = vmax.f32 %v948, 0.0
    %v1017 = vmax.f32 %v999, 0.0
    %v1018 = vmax.f32 %v1001, 0.0
    %1019 = vst [vmem:[#allocation14] sm:$0xff] %v1003
    %1020 = vst [vmem:[#allocation14 + $0x8] sm:$0xff] %v1004
    %1021 = vst [vmem:[#allocation14 + $0x10] sm:$0xff] %v1005
    %1022 = vst [vmem:[#allocation14 + $0x18] sm:$0xff] %v1006
    %1023 = vst [vmem:[#allocation14 + $0x20] sm:$0xff] %v1007
    %1024 = vst [vmem:[#allocation14 + $0x28] sm:$0xff] %v1008
    %1025 = vst [vmem:[#allocation14 + $0x30] sm:$0xff] %v1009
    %1026 = vst [vmem:[#allocation14 + $0x38] sm:$0xff] %v1010
    %1027 = vst [vmem:[#allocation14 + $0x40] sm:$0xff] %v1011
    %1028 = vst [vmem:[#allocation14 + $0x48] sm:$0xff] %v1012
    %1029 = vst [vmem:[#allocation14 + $0x50] sm:$0xff] %v1013
    %1030 = vst [vmem:[#allocation14 + $0x58] sm:$0xff] %v1014
    %1031 = vst [vmem:[#allocation14 + $0x60] sm:$0xff] %v1015
    %1032 = vst [vmem:[#allocation14 + $0x68] sm:$0xff] %v1016
    %1033 = vst [vmem:[#allocation14 + $0x70] sm:$0xff] %v1017
    %1034 = vst [vmem:[#allocation14 + $0x78] sm:$0xff] %v1018
    // Predicated region
    $region58: #{tpu_custom_call.1} parent=1 // pred_check
      _
    $region59: #{tpu_custom_call.1} parent=1 // pred_check_branch
      %1036 = sbr.rel (0) target = $region61
    $region60: #{tpu_custom_call.1} parent=1 // pred_region
      %s1038 = ssub.s32 2048, 2048
      %1039 = vsyncadd [#allocation4], %s1038
      %s1040 = sshll.u32 [#allocation14], 4
      %s1041 = int_to_ptr.vmem [resolvable:$true] %s1040
      %1046 = dma.vmem_to_hbm [thread:$0]  %s1041, 2048, %s7, [#allocation4], 512, 512, 32
    $region61: #{tpu_custom_call.1} parent=1 // pred_fallthru
      _
    // Predicated region
    $region62: #{tpu_custom_call.1} parent=1 // pred_check
      _
    $region63: #{tpu_custom_call.1} parent=1 // pred_check_branch
      %1048 = sbr.rel (0) target = $region65
    $region64: #{tpu_custom_call.1} parent=1 // pred_region
      %1049 = dma.done [#allocation4], 2048
    $region65: #{tpu_custom_call.1} parent=1 // pred_fallthru
      _
    %1050 = vsyncpa [#allocation3], 1
    %1051 = vsyncpa [#allocation6], 1
    %1052 = vsyncpa [#allocation9], 1
    %1053 = vsyncpa [#allocation12], 1
    %1054 = vsyncpa [#allocation4], 1

</llo_original>
